<compile_context>
chip_gen: v5e
topology: v5e:2x2
jax: 0.10.0
libtpu: 0.0.40
codegen_flags: <defaults>
</compile_context>

<pallas_src>
import numpy as np
import jax
import jax.numpy as jnp
from jax.experimental import pallas as pl
from jax.experimental.pallas import tpu as pltpu


# --------------------------------------------------------------------------
# Kernel
# --------------------------------------------------------------------------
def _bayesian_gaussian_kernel(x1_ref, x2_ref, w1_ref, w2_ref, o_ref):
    # Inputs arrive in their native dtype; compute in f32 on the VPU.
    x1 = x1_ref[...].astype(jnp.float32)          # (tm, col)
    x2 = x2_ref[...].astype(jnp.float32)          # (tm, col)
    w1 = w1_ref[...].astype(jnp.float32)          # (1, col) lane-dense, sublane-broadcast
    w2 = w2_ref[...].astype(jnp.float32)          # (1, col)

    # One fused elementwise product (VPU); a single reduction over K follows.
    prod = x1 * w1 + x2 * w2                      # (tm, col), f32

    col = prod.shape[-1]
    if col % 128 == 0 and col > 128:
        # Stage 1: VALU pre-sum of 128-lane chunks (aligned lane slices, cheap).
        acc = prod[:, 0:128]
        for c in range(128, col, 128):
            acc = acc + prod[:, c:c + 128]
        # Stage 2: single cross-lane (XLU) reduce.
        y = jnp.sum(acc, axis=-1, keepdims=True)
    else:
        y = jnp.sum(prod, axis=-1, keepdims=True)

    o_ref[...] = y.astype(o_ref.dtype)


# --------------------------------------------------------------------------
# Tiling / resource heuristics
# --------------------------------------------------------------------------
def _choose_row_tile(row, col, in_itemsize,
                     target_steps=8,
                     max_bytes_per_step=2 * 1024 * 1024,
                     min_bytes_per_step=256 * 1024,
                     max_tile=1024):
    """Row tile giving ~target_steps pipelined grid steps, ~0.25-2 MB/step."""
    if row <= 8:
        return row
    per_row_bytes = 2 * col * in_itemsize                       # two input streams
    tm_cap = max(8, max_bytes_per_step // max(per_row_bytes, 1))  # byte ceiling
    tm_floor = max(8, min_bytes_per_step // max(per_row_bytes, 1))  # don't over-split tiny work
    tm_steps = max(8, pl.cdiv(row, target_steps))               # aim for >= target_steps
    tm = min(tm_cap, max(tm_steps, tm_floor), max_tile, row)
    if tm >= row:
        return row                                              # single full-dim block
    return max(8, (tm // 8) * 8)                                # keep sublane-aligned


def _vmem_limit_bytes(tm, col, in_itemsize, out_itemsize):
    """Actual double-buffered working set with margin (safe on v5e/v6e/v7x)."""
    n_buf = 2
    col_pad = ((col + 127) // 128) * 128
    inputs = 2 * n_buf * tm * col * in_itemsize                 # two input streams
    weights = 2 * n_buf * 8 * col_pad * 4                       # (1,col) pads to (8, col_pad)
    out = n_buf * tm * 128 * out_itemsize                       # (tm,1) pads to (tm,128)
    total = inputs + weights + out
    return int(min(max(2 * total, 16 * 1024 * 1024), 32 * 1024 * 1024))


# --------------------------------------------------------------------------
# Wrapper
# --------------------------------------------------------------------------
def bayesian_gaussian_forward(Input1, Input2, weights1, weights2, *, tm=None):
    row, col = Input1.shape
    assert Input2.shape == (row, col)
    assert weights1.shape == (col, 1) and weights2.shape == (col, 1)

    # Weights are tiny: reshape to lane-dense (1, col) in the wrapper.
    w1 = jnp.reshape(weights1, (1, col))
    w2 = jnp.reshape(weights2, (1, col))

    # Keep the caller's input dtype on the wire (no f32 upcast -> no 2x HBM traffic).
    in_itemsize = Input1.dtype.itemsize
    out_dtype = jnp.result_type(Input1.dtype, weights1.dtype, jnp.float32)
    out_itemsize = jnp.dtype(out_dtype).itemsize

    if tm is None:
        tm = _choose_row_tile(row, col, in_itemsize)
    tm = int(min(tm, row))
    grid = (pl.cdiv(row, tm),)

    cost = pl.CostEstimate(
        flops=4 * row * col,                                    # 2 mul + 2 add per element
        transcendentals=0,
        bytes_accessed=2 * row * col * in_itemsize + 2 * col * 4 + row * out_itemsize,
    )

    return pl.pallas_call(
        _bayesian_gaussian_kernel,
        out_shape=jax.ShapeDtypeStruct((row, 1), out_dtype),
        grid=grid,
        in_specs=[
            pl.BlockSpec((tm, col), lambda i: (i, 0)),          # row-tiled, auto double-buffered
            pl.BlockSpec((tm, col), lambda i: (i, 0)),
            pl.BlockSpec((1, col), lambda i: (0, 0)),           # lane-dense weights, resident
            pl.BlockSpec((1, col), lambda i: (0, 0)),
        ],
        out_specs=pl.BlockSpec((tm, 1), lambda i: (i, 0)),
        compiler_params=pltpu.CompilerParams(
            dimension_semantics=("parallel",),                  # shard row tiles across TCs (v7x)
            vmem_limit_bytes=_vmem_limit_bytes(tm, col, in_itemsize, out_itemsize),
        ),
        cost_estimate=cost,
    )(Input1, Input2, w1, w2)


# --------------------------------------------------------------------------
# Weight construction (replicates the module's __init__)
# --------------------------------------------------------------------------
def make_weights(column, N_c, r, key):
    mean1 = np.ones((column, 1), dtype=np.float32)
    std1 = np.ones((column, 1), dtype=np.float32)
    mean2 = np.ones((column, 1), dtype=np.float32)
    std2 = np.ones((column, 1), dtype=np.float32)
    for j in range(r * N_c + 1):
        if j == 0:
            mean1[j, 0] = 1.0
            std1[j, 0] = 1.0
        else:
            v = 0.1 ** int((j - 1) / N_c + 1)
            mean1[j, 0] = v
            std1[j, 0] = v
    for j in range(r * N_c + 1):
        if j == 0:
            mean2[j, 0] = 0.1
            std2[j, 0] = 0.1
        else:
            v = 0.01 ** int((j - 1) / N_c + 1)
            mean2[j, 0] = v
            std2[j, 0] = v

    k1, k2 = jax.random.split(key)
    w1 = jnp.asarray(mean1) + jnp.asarray(std1) * jax.random.normal(
        k1, (column, 1), dtype=jnp.float32)
    w2 = jnp.asarray(mean2) + jnp.asarray(std2) * jax.random.normal(
        k2, (column, 1), dtype=jnp.float32)
    return w1, w2


# --------------------------------------------------------------------------
# Self-test
# --------------------------------------------------------------------------
if __name__ == "__main__":
    N_c, r = 3, 4  # r * N_c + 1 = 13 <= every column size used below

    key = jax.random.PRNGKey(0)

    cases = [
        dict(row=2048, column=256, tm=None, dtype=jnp.float32),   # multi-step pipelined grid
        dict(row=1000, column=256, tm=312,  dtype=jnp.float32),   # uneven tiling (partial block)
        dict(row=300,  column=96,  tm=None, dtype=jnp.float32),   # tiny / non-128 col, 1 block
        dict(row=512,  column=256, tm=None, dtype=jnp.bfloat16),  # native bf16 on the wire
    ]

    for c in cases:
        key, k1, k2, kw = jax.random.split(key, 4)
        row, column, dtype = c["row"], c["column"], c["dtype"]
        Input1 = jax.random.normal(k1, (row, column), dtype=jnp.float32).astype(dtype)
        Input2 = jax.random.normal(k2, (row, column), dtype=jnp.float32).astype(dtype)
        w1, w2 = make_weights(column, N_c, r, kw)

        y = bayesian_gaussian_forward(Input1, Input2, w1, w2, tm=c["tm"])
        y = jax.block_until_ready(y)

        # Reference check against plain JAX (f32 math).
        y_ref = Input1.astype(jnp.float32) @ w1 + Input2.astype(jnp.float32) @ w2
        tol = 2e-2 if dtype == jnp.bfloat16 else 1e-4
        np.testing.assert_allclose(np.asarray(y, dtype=np.float32),
                                   np.asarray(y_ref), rtol=tol, atol=tol)
        assert y.shape == (row, 1)

    print("KERNEL_OK")
</pallas_src>

<mosaic_0001>
module attributes {stable_mosaic.version = 11 : i64} {
  func.func @_bayesian_gaussian_kernel(%arg0: i32, %arg1: memref<256x256xf32, #tpu.memory_space<vmem>>, %arg2: memref<256x256xf32, #tpu.memory_space<vmem>>, %arg3: memref<1x256xf32, #tpu.memory_space<vmem>>, %arg4: memref<1x256xf32, #tpu.memory_space<vmem>>, %arg5: memref<256x1xf32, #tpu.memory_space<vmem>>) attributes {dimension_semantics = [#tpu.dimension_semantics<parallel>], iteration_bounds = array<i64: 8>, scalar_prefetch = 0 : i64, scratch_operands = 0 : i64, tpu.core_type = #tpu.core_type<tc>, window_params = [{transform_indices = @transform_0, window_bounds = array<i64: 256, 256>}, {transform_indices = @transform_1, window_bounds = array<i64: 256, 256>}, {pipeline_mode = #tpu.pipeline_mode<synchronous>, transform_indices = @transform_2, window_bounds = array<i64: 1, 256>}, {pipeline_mode = #tpu.pipeline_mode<synchronous>, transform_indices = @transform_3, window_bounds = array<i64: 1, 256>}, {transform_indices = @transform_4, window_bounds = array<i64: 256, 1>}]} {
    %c0 = arith.constant 0 : index
    %c0_0 = arith.constant 0 : index
    %0 = vector.load %arg1[%c0, %c0_0] : memref<256x256xf32, #tpu.memory_space<vmem>>, vector<256x256xf32>
    %c0_1 = arith.constant 0 : index
    %c0_2 = arith.constant 0 : index
    %1 = vector.load %arg2[%c0_1, %c0_2] : memref<256x256xf32, #tpu.memory_space<vmem>>, vector<256x256xf32>
    %c0_3 = arith.constant 0 : index
    %c0_4 = arith.constant 0 : index
    %2 = vector.load %arg3[%c0_3, %c0_4] : memref<1x256xf32, #tpu.memory_space<vmem>>, vector<1x256xf32>
    %c0_5 = arith.constant 0 : index
    %c0_6 = arith.constant 0 : index
    %3 = vector.load %arg4[%c0_5, %c0_6] : memref<1x256xf32, #tpu.memory_space<vmem>>, vector<1x256xf32>
    %4 = vector.broadcast %2 : vector<1x256xf32> to vector<256x256xf32>
    %5 = arith.mulf %0, %4 : vector<256x256xf32>
    %6 = vector.broadcast %3 : vector<1x256xf32> to vector<256x256xf32>
    %7 = arith.mulf %1, %6 : vector<256x256xf32>
    %8 = arith.addf %5, %7 : vector<256x256xf32>
    %9 = vector.extract_strided_slice %8 {offsets = [0, 0], sizes = [256, 128], strides = [1, 1]} : vector<256x256xf32> to vector<256x128xf32>
    %10 = vector.extract_strided_slice %8 {offsets = [0, 128], sizes = [256, 128], strides = [1, 1]} : vector<256x256xf32> to vector<256x128xf32>
    %11 = arith.addf %9, %10 : vector<256x128xf32>
    %cst = arith.constant dense<0.000000e+00> : vector<256xf32>
    %12 = vector.multi_reduction <add>, %11, %cst [1] : vector<256x128xf32> to vector<256xf32>
    %13 = vector.shape_cast %12 : vector<256xf32> to vector<256x1xf32>
    %c0_7 = arith.constant 0 : index
    %c0_8 = arith.constant 0 : index
    %14 = vector.load %arg5[%c0_7, %c0_8] : memref<256x1xf32, #tpu.memory_space<vmem>>, vector<256x1xf32>
    tpu.vector_store %arg5[%c0_7, %c0_8], %13 {strides = array<i32>} : memref<256x1xf32, #tpu.memory_space<vmem>>, vector<256x1xf32>,
    return
  }
  func.func @transform_0(%arg0: i32) -> (i32, i32) {
    %c0_i32 = arith.constant 0 : i32
    %c0_i32_0 = arith.constant 0 : i32
    return %arg0, %c0_i32 : i32, i32
  }
  func.func @transform_1(%arg0: i32) -> (i32, i32) {
    %c0_i32 = arith.constant 0 : i32
    %c0_i32_0 = arith.constant 0 : i32
    return %arg0, %c0_i32 : i32, i32
  }
  func.func @transform_2(%arg0: i32) -> (i32, i32) {
    %c0_i32 = arith.constant 0 : i32
    %c0_i32_0 = arith.constant 0 : i32
    %c0_i32_1 = arith.constant 0 : i32
    return %c0_i32, %c0_i32_0 : i32, i32
  }
  func.func @transform_3(%arg0: i32) -> (i32, i32) {
    %c0_i32 = arith.constant 0 : i32
    %c0_i32_0 = arith.constant 0 : i32
    %c0_i32_1 = arith.constant 0 : i32
    return %c0_i32, %c0_i32_0 : i32, i32
  }
  func.func @transform_4(%arg0: i32) -> (i32, i32) {
    %c0_i32 = arith.constant 0 : i32
    %c0_i32_0 = arith.constant 0 : i32
    return %arg0, %c0_i32 : i32, i32
  }
}

</mosaic_0001>

<llo_original>
// kernel: tpu_custom_call.1
$region0: #{tpu_custom_call.1}
  #allocation0 [shape = 'u32[]', space=smem, size = 0x4, offset = 0x4, fixed_abs, tag = 'smem constant byte address 0x4 - core index']
  #allocation1 [shape = 'u32[72,128]{1,0:T(1,128)}', space=vmem, size = 0x9000, scoped, tag = 'internal scratch']
  %s0 = inlined_call_operand.hbm [shape: f32[2048,256], index: 0, kind: input, shape index: {}]
  %s1 = inlined_call_operand.hbm [shape: f32[2048,256], index: 1, kind: input, shape index: {}]
  %s2 = inlined_call_operand.hbm [shape: f32[1,256], index: 2, kind: input, shape index: {}]
  %s3 = inlined_call_operand.hbm [shape: f32[1,256], index: 3, kind: input, shape index: {}]
  %s4 = inlined_call_operand.vmem [shape: f32[2048,1], index: 4, kind: output, shape index: {}]
  %s5 = sld [smem:[#allocation0]]
  $region65: #{tpu_custom_call.1} parent=0
    _
  %s7 = ssub.s32 1, %s5
  %s8 = scalar_select 0, %s7, %s5
  $region1: #{tpu_custom_call.1} parent=0
    #allocation2 [shape = 'u8[524288]{0}', space=vmem, size = 0x80000, scoped, tag = 'input window, operand 0']
    #allocation3 [shape = 's32[2]{0}', space=sflag, size = 0x8, scoped, tag = 'scoped memory for tpu_custom_call.1']
    #allocation4 [shape = 'u8[524288]{0}', space=vmem, size = 0x80000, scoped, tag = 'input window, operand 1']
    #allocation5 [shape = 's32[2]{0}', space=sflag, size = 0x8, scoped, tag = 'scoped memory for tpu_custom_call.1']
    #allocation6 [shape = 'u8[1024]{0}', space=vmem, size = 0x400, scoped, tag = 'input window, operand 2, single buffered']
    #allocation7 [shape = 'u8[1024]{0}', space=vmem, size = 0x400, scoped, tag = 'input window, operand 3, single buffered']
    #allocation8 [shape = 's32[1]{0}', space=sflag, size = 0x4, scoped, tag = 'scoped memory for tpu_custom_call.1']
    %9 = vsyncpa [#allocation3], 0
    %s10 = scalar_lea.sflag [#allocation3], 1
    %11 = vsyncpa %s10, 0
    %12 = vsyncpa [#allocation5], 0
    %s13 = scalar_lea.sflag [#allocation5], 1
    %14 = vsyncpa %s13, 0
    %15 = vsyncpa [#allocation8], 0
    loop: start=0, step=1, limit=10
    $region2: #{tpu_custom_call.1} parent=1 // loop_pre_header
      _
    $region3: #{tpu_custom_call.1} parent=1 // loop_header
      %s17 = sphi 0, %s21
      %p18 = scmp.ge.s32.totalorder %s17, 10
      %s27 = sphi 0, %s29
      %s30 = sphi 0, %s27
      %s31 = sphi 0, %s30
      %s47 = sphi 0, %s31
      %s53 = sphi 0, %s55
      %s56 = sphi 0, %s53
      %s57 = sphi 0, %s56
      %s73 = sphi 0, %s57
      %s77 = sphi 0, %s77
      %s79 = sphi 0, %s77
      %s80 = sphi 0, %s79
      %s94 = sphi 0, %s80
      %s98 = sphi 0, %s98
      %s100 = sphi 0, %s98
      %s101 = sphi 0, %s100
      %s115 = sphi 0, %s101
      %s121 = sphi 0, %s123
      %s124 = sphi 0, %s121
      %s125 = sphi 0, %s124
      %s141 = sphi 0, %s125
    $region4: #{tpu_custom_call.1} parent=1 // loop_header_branch
      %20 = sbr.rel (%p18) target = $region8
    $region5: #{tpu_custom_call.1} parent=1 // loop_body
      %s22 = ssub.s32 %s17, 1
      %s23 = ssub.s32 %s17, 2
      %s24 = sadd.s32 %s17, 1
      %s25 = ssub.s32 %s17, %s24
      %p26 = scmp.eq.s32.totalorder %s25, 0
      %s28 = sadd.s32 %s27, 1
      %s29 = scalar_select %p26, %s27, %s28
      %p32 = pneg %p26
      %p33 = scmp.eq.s32.totalorder %s17, 7
      %p34 = por %p32, %p33
      %p35 = scmp.ne.s32.totalorder %s27, %s30
      %p36 = scmp.eq.s32.totalorder %s17, 0
      %p37 = por %p35, %p36
      %p38 = scmp.ne.s32.totalorder %s27, %s30
      %p39 = scmp.eq.s32.totalorder %s22, 7
      %p40 = por %p38, %p39
      %p41 = scmp.ne.s32.totalorder %s30, %s31
      %p42 = scmp.eq.s32.totalorder %s22, 0
      %p43 = por %p41, %p42
      %p44 = scmp.ne.s32.totalorder %s30, %s31
      %p45 = scmp.eq.s32.totalorder %s23, 7
      %p46 = por %p44, %p45
      %p48 = scmp.ne.s32.totalorder %s31, %s47
      %p49 = scmp.eq.s32.totalorder %s23, 0
      %p50 = por %p48, %p49
      %s51 = ssub.s32 %s17, %s24
      %p52 = scmp.eq.s32.totalorder %s51, 0
      %s54 = sadd.s32 %s53, 1
      %s55 = scalar_select %p52, %s53, %s54
      %p58 = pneg %p52
      %p59 = scmp.eq.s32.totalorder %s17, 7
      %p60 = por %p58, %p59
      %p61 = scmp.ne.s32.totalorder %s53, %s56
      %p62 = scmp.eq.s32.totalorder %s17, 0
      %p63 = por %p61, %p62
      %p64 = scmp.ne.s32.totalorder %s53, %s56
      %p65 = scmp.eq.s32.totalorder %s22, 7
      %p66 = por %p64, %p65
      %p67 = scmp.ne.s32.totalorder %s56, %s57
      %p68 = scmp.eq.s32.totalorder %s22, 0
      %p69 = por %p67, %p68
      %p70 = scmp.ne.s32.totalorder %s56, %s57
      %p71 = scmp.eq.s32.totalorder %s23, 7
      %p72 = por %p70, %p71
      %p74 = scmp.ne.s32.totalorder %s57, %s73
      %p75 = scmp.eq.s32.totalorder %s23, 0
      %p76 = por %p74, %p75
      %s78 = sadd.s32 %s77, 1
      %p81 = scmp.eq.s32.totalorder %s17, 7
      %p82 = scmp.ne.s32.totalorder %s77, %s79
      %p83 = scmp.eq.s32.totalorder %s17, 0
      %p84 = por %p82, %p83
      %p85 = scmp.ne.s32.totalorder %s77, %s79
      %p86 = scmp.eq.s32.totalorder %s22, 7
      %p87 = por %p85, %p86
      %p88 = scmp.ne.s32.totalorder %s79, %s80
      %p89 = scmp.eq.s32.totalorder %s22, 0
      %p90 = por %p88, %p89
      %p91 = scmp.ne.s32.totalorder %s79, %s80
      %p92 = scmp.eq.s32.totalorder %s23, 7
      %p93 = por %p91, %p92
      %p95 = scmp.ne.s32.totalorder %s80, %s94
      %p96 = scmp.eq.s32.totalorder %s23, 0
      %p97 = por %p95, %p96
      %s99 = sadd.s32 %s98, 1
      %p102 = scmp.eq.s32.totalorder %s17, 7
      %p103 = scmp.ne.s32.totalorder %s98, %s100
      %p104 = scmp.eq.s32.totalorder %s17, 0
      %p105 = por %p103, %p104
      %p106 = scmp.ne.s32.totalorder %s98, %s100
      %p107 = scmp.eq.s32.totalorder %s22, 7
      %p108 = por %p106, %p107
      %p109 = scmp.ne.s32.totalorder %s100, %s101
      %p110 = scmp.eq.s32.totalorder %s22, 0
      %p111 = por %p109, %p110
      %p112 = scmp.ne.s32.totalorder %s100, %s101
      %p113 = scmp.eq.s32.totalorder %s23, 7
      %p114 = por %p112, %p113
      %p116 = scmp.ne.s32.totalorder %s101, %s115
      %p117 = scmp.eq.s32.totalorder %s23, 0
      %p118 = por %p116, %p117
      %s119 = ssub.s32 %s17, %s24
      %p120 = scmp.eq.s32.totalorder %s119, 0
      %s122 = sadd.s32 %s121, 1
      %s123 = scalar_select %p120, %s121, %s122
      %p126 = pneg %p120
      %p127 = scmp.eq.s32.totalorder %s17, 7
      %p128 = por %p126, %p127
      %p129 = scmp.ne.s32.totalorder %s121, %s124
      %p130 = scmp.eq.s32.totalorder %s17, 0
      %p131 = por %p129, %p130
      %p132 = scmp.ne.s32.totalorder %s121, %s124
      %p133 = scmp.eq.s32.totalorder %s22, 7
      %p134 = por %p132, %p133
      %p135 = scmp.ne.s32.totalorder %s124, %s125
      %p136 = scmp.eq.s32.totalorder %s22, 0
      %p137 = por %p135, %p136
      %p138 = scmp.ne.s32.totalorder %s124, %s125
      %p139 = scmp.eq.s32.totalorder %s23, 7
      %p140 = por %p138, %p139
      %p142 = scmp.ne.s32.totalorder %s125, %s141
      %p143 = scmp.eq.s32.totalorder %s23, 0
      %p144 = por %p142, %p143
      %p145 = scmp.le.s32.totalorder 1, %s17
      %p146 = scmp.lt.s32.totalorder %s17, 9
      %p147 = pnand %p145, %p146
      %p148 = pneg %p147
      // Predicated region
      $region9: #{tpu_custom_call.1} parent=5 // pred_check
        _
      $region10: #{tpu_custom_call.1} parent=5 // pred_check_branch
        %150 = sbr.rel (%p147) target = $region12
      $region11: #{tpu_custom_call.1} parent=5 // pred_region
        %s151 = ssub.s32 %s17, 1
        // Predicated region
        $region13: #{tpu_custom_call.1} parent=11 // pred_check
          %p152 = pneg %p90
        $region14: #{tpu_custom_call.1} parent=11 // pred_check_branch
          %154 = sbr.rel (%p152) target = $region16
        $region15: #{tpu_custom_call.1} parent=11 // pred_region
          %156 = vsyncadd [#allocation5], 0
          %s158 = sshll.u32 %s2, 4
          %s159 = int_to_ptr.hbm [resolvable:$true] %s158
          %s160 = sshll.u32 [#allocation6], 4
          %s161 = int_to_ptr.vmem [resolvable:$true] %s160
          %163 = dma.hbm_to_vmem [thread:$0]  %s159, 32, %s161, [#allocation5]
        $region16: #{tpu_custom_call.1} parent=11 // pred_fallthru
          _
        // Predicated region
        $region17: #{tpu_custom_call.1} parent=11 // pred_check
          %p164 = pneg %p111
        $region18: #{tpu_custom_call.1} parent=11 // pred_check_branch
          %166 = sbr.rel (%p164) target = $region20
        $region19: #{tpu_custom_call.1} parent=11 // pred_region
          %168 = vsyncadd [#allocation8], 0
          %s170 = sshll.u32 %s3, 4
          %s171 = int_to_ptr.hbm [resolvable:$true] %s170
          %s172 = sshll.u32 [#allocation7], 4
          %s173 = int_to_ptr.vmem [resolvable:$true] %s172
          %175 = dma.hbm_to_vmem [thread:$0]  %s171, 32, %s173, [#allocation8]
        $region20: #{tpu_custom_call.1} parent=11 // pred_fallthru
          _
      $region12: #{tpu_custom_call.1} parent=5 // pred_fallthru
        _
      %p176 = scmp.lt.s32.totalorder %s17, 8
      // Predicated region
      $region21: #{tpu_custom_call.1} parent=5 // pred_check
        %p177 = pneg %p176
      $region22: #{tpu_custom_call.1} parent=5 // pred_check_branch
        %179 = sbr.rel (%p177) target = $region24
      $region23: #{tpu_custom_call.1} parent=5 // pred_region
        // Predicated region
        $region25: #{tpu_custom_call.1} parent=23 // pred_check
          %p180 = pneg %p37
        $region26: #{tpu_custom_call.1} parent=23 // pred_check_branch
          %182 = sbr.rel (%p180) target = $region28
        $region27: #{tpu_custom_call.1} parent=23 // pred_region
          %s183 = sand.u32 %s27, 1
          %s184 = scalar_lea.sflag [#allocation3], %s183
          %s185 = sand.u32 %s27, 1
          %s186 = smul.addr %s185, 512
          %s187 = scalar_lea.vmem [#allocation2], %s186
          %s188 = smul.u32 32, %s17
          %190 = vsyncadd %s184, 0
          %s191 = smul.addr %s188, 2
          %s192 = smul.addr %s191, 8
          %s193 = scalar_lea.hbm %s0, %s192
          %s194 = sshll.u32 %s193, 4
          %s195 = int_to_ptr.hbm [resolvable:$true] %s194
          %s196 = sshll.u32 %s187, 4
          %s197 = int_to_ptr.vmem [resolvable:$true] %s196
          %202 = dma.hbm_to_vmem [thread:$0]  %s195, 8192, %s197, %s184, 256, 256, 16
        $region28: #{tpu_custom_call.1} parent=23 // pred_fallthru
          _
        // Predicated region
        $region29: #{tpu_custom_call.1} parent=23 // pred_check
          %p203 = pneg %p63
        $region30: #{tpu_custom_call.1} parent=23 // pred_check_branch
          %205 = sbr.rel (%p203) target = $region32
        $region31: #{tpu_custom_call.1} parent=23 // pred_region
          %s206 = sand.u32 %s17, 1
          %s207 = scalar_lea.sflag [#allocation5], %s206
          %s208 = sand.u32 %s53, 1
          %s209 = smul.addr %s208, 512
          %s210 = scalar_lea.vmem [#allocation4], %s209
          %s211 = smul.u32 32, %s17
          %213 = vsyncadd %s207, 0
          %s214 = smul.addr %s211, 2
          %s215 = smul.addr %s214, 8
          %s216 = scalar_lea.hbm %s1, %s215
          %s217 = sshll.u32 %s216, 4
          %s218 = int_to_ptr.hbm [resolvable:$true] %s217
          %s219 = sshll.u32 %s210, 4
          %s220 = int_to_ptr.vmem [resolvable:$true] %s219
          %225 = dma.hbm_to_vmem [thread:$0]  %s218, 8192, %s220, %s207, 256, 256, 16
        $region32: #{tpu_custom_call.1} parent=23 // pred_fallthru
          _
      $region24: #{tpu_custom_call.1} parent=5 // pred_fallthru
        _
      %p226 = scmp.le.s32.totalorder 1, %s17
      %p227 = scmp.lt.s32.totalorder %s17, 9
      %p228 = pnand %p226, %p227
      %p229 = pneg %p228
      // Predicated region
      $region33: #{tpu_custom_call.1} parent=5 // pred_check
        _
      $region34: #{tpu_custom_call.1} parent=5 // pred_check_branch
        %231 = sbr.rel (%p228) target = $region36
      $region35: #{tpu_custom_call.1} parent=5 // pred_region
        %s232 = ssub.s32 %s17, 1
        %s233 = sand.u32 %s30, 1
        %s234 = scalar_lea.sflag [#allocation3], %s233
        %s235 = sand.u32 %s30, 1
        %s236 = smul.addr %s235, 512
        %s237 = scalar_lea.vmem [#allocation2], %s236
        // Predicated region
        $region37: #{tpu_custom_call.1} parent=35 // pred_check
          %p238 = pneg %p43
        $region38: #{tpu_custom_call.1} parent=35 // pred_check_branch
          %240 = sbr.rel (%p238) target = $region40
        $region39: #{tpu_custom_call.1} parent=35 // pred_region
          %242 = dma.done %s234, 8192
        $region40: #{tpu_custom_call.1} parent=35 // pred_fallthru
          _
        %s243 = sand.u32 %s22, 1
        %s244 = scalar_lea.sflag [#allocation5], %s243
        %s245 = sand.u32 %s56, 1
        %s246 = smul.addr %s245, 512
        %s247 = scalar_lea.vmem [#allocation4], %s246
        // Predicated region
        $region41: #{tpu_custom_call.1} parent=35 // pred_check
          %p248 = pneg %p69
        $region42: #{tpu_custom_call.1} parent=35 // pred_check_branch
          %250 = sbr.rel (%p248) target = $region44
        $region43: #{tpu_custom_call.1} parent=35 // pred_region
          %252 = dma.done %s244, 8192
        $region44: #{tpu_custom_call.1} parent=35 // pred_fallthru
          _
        // Predicated region
        $region45: #{tpu_custom_call.1} parent=35 // pred_check
          %p253 = pneg %p90
        $region46: #{tpu_custom_call.1} parent=35 // pred_check_branch
          %255 = sbr.rel (%p253) target = $region48
        $region47: #{tpu_custom_call.1} parent=35 // pred_region
          %257 = dma.done [#allocation5], 32
        $region48: #{tpu_custom_call.1} parent=35 // pred_fallthru
          _
        // Predicated region
        $region49: #{tpu_custom_call.1} parent=35 // pred_check
          %p258 = pneg %p111
        $region50: #{tpu_custom_call.1} parent=35 // pred_check_branch
          %260 = sbr.rel (%p258) target = $region52
        $region51: #{tpu_custom_call.1} parent=35 // pred_region
          %262 = dma.done [#allocation8], 32
        $region52: #{tpu_custom_call.1} parent=35 // pred_fallthru
          _
        %s263 = sand.u32 %s30, 1
        %s264 = scalar_lea.sflag [#allocation3], %s263
        %s265 = sand.u32 %s30, 1
        %s266 = smul.addr %s265, 512
        %s267 = scalar_lea.vmem [#allocation2], %s266
        %p268 = pneg %p43
        %p269 = pneg %p40
        %s270 = sand.u32 %s22, 1
        %s271 = scalar_lea.sflag [#allocation5], %s270
        %s272 = sand.u32 %s56, 1
        %s273 = smul.addr %s272, 512
        %s274 = scalar_lea.vmem [#allocation4], %s273
        %p275 = pneg %p69
        %p276 = pneg %p66
        %p277 = pneg %p90
        %p278 = pneg %p87
        %p279 = pneg %p111
        %p280 = pneg %p108
        %p281 = pneg %p137
        %p282 = pneg %p134
        %s283 = smul.u32 32, %s22
        %p284 = scmp.lt.s32.totalorder %s283, 255
        %s285 = scalar_select %p284, %s283, 255
        %s286 = smul.addr %s285, 8
        %s287 = scalar_lea.vmem %s4, %s286
        %s288 = smul.u32 32, %s22
        %s289 = smul.u32 32, %s22
        %s290 = smul.u32 32, %s22
        %p291 = scmp.lt.s32.totalorder %s290, 255
        %s292 = scalar_select %p291, %s290, 255
        %s293 = smul.addr %s292, 8
        %s294 = scalar_lea.vmem %s4, %s293
        %s295 = smul.u32 32, %s22
        %v296 = vld [vmem:[%s237] sm:$0xff]
        %v297 = vld [vmem:[%s237 + $0x8] sm:$0xff]
        %v298 = vld [vmem:[%s237 + $0x10] sm:$0xff]
        %v299 = vld [vmem:[%s237 + $0x18] sm:$0xff]
        %v300 = vld [vmem:[%s237 + $0x20] sm:$0xff]
        %v301 = vld [vmem:[%s237 + $0x28] sm:$0xff]
        %v302 = vld [vmem:[%s237 + $0x30] sm:$0xff]
        %v303 = vld [vmem:[%s237 + $0x38] sm:$0xff]
        %v304 = vld [vmem:[%s237 + $0x40] sm:$0xff]
        %v305 = vld [vmem:[%s237 + $0x48] sm:$0xff]
        %v306 = vld [vmem:[%s237 + $0x50] sm:$0xff]
        %v307 = vld [vmem:[%s237 + $0x58] sm:$0xff]
        %v308 = vld [vmem:[%s237 + $0x60] sm:$0xff]
        %v309 = vld [vmem:[%s237 + $0x68] sm:$0xff]
        %v310 = vld [vmem:[%s237 + $0x70] sm:$0xff]
        %v311 = vld [vmem:[%s237 + $0x78] sm:$0xff]
        %v312 = vld [vmem:[%s237 + $0x80] sm:$0xff]
        %v313 = vld [vmem:[%s237 + $0x88] sm:$0xff]
        %v314 = vld [vmem:[%s237 + $0x90] sm:$0xff]
        %v315 = vld [vmem:[%s237 + $0x98] sm:$0xff]
        %v316 = vld [vmem:[%s237 + $0xa0] sm:$0xff]
        %v317 = vld [vmem:[%s237 + $0xa8] sm:$0xff]
        %v318 = vld [vmem:[%s237 + $0xb0] sm:$0xff]
        %v319 = vld [vmem:[%s237 + $0xb8] sm:$0xff]
        %v320 = vld [vmem:[%s237 + $0xc0] sm:$0xff]
        %v321 = vld [vmem:[%s237 + $0xc8] sm:$0xff]
        %v322 = vld [vmem:[%s237 + $0xd0] sm:$0xff]
        %v323 = vld [vmem:[%s237 + $0xd8] sm:$0xff]
        %v324 = vld [vmem:[%s237 + $0xe0] sm:$0xff]
        %v325 = vld [vmem:[%s237 + $0xe8] sm:$0xff]
        %v326 = vld [vmem:[%s237 + $0xf0] sm:$0xff]
        %v327 = vld [vmem:[%s237 + $0xf8] sm:$0xff]
        %v328 = vld [vmem:[%s237 + $0x100] sm:$0xff]
        %v329 = vld [vmem:[%s237 + $0x108] sm:$0xff]
        %v330 = vld [vmem:[%s237 + $0x110] sm:$0xff]
        %v331 = vld [vmem:[%s237 + $0x118] sm:$0xff]
        %v332 = vld [vmem:[%s237 + $0x120] sm:$0xff]
        %v333 = vld [vmem:[%s237 + $0x128] sm:$0xff]
        %v334 = vld [vmem:[%s237 + $0x130] sm:$0xff]
        %v335 = vld [vmem:[%s237 + $0x138] sm:$0xff]
        %v336 = vld [vmem:[%s237 + $0x140] sm:$0xff]
        %v337 = vld [vmem:[%s237 + $0x148] sm:$0xff]
        %v338 = vld [vmem:[%s237 + $0x150] sm:$0xff]
        %v339 = vld [vmem:[%s237 + $0x158] sm:$0xff]
        %v340 = vld [vmem:[%s237 + $0x160] sm:$0xff]
        %v341 = vld [vmem:[%s237 + $0x168] sm:$0xff]
        %v342 = vld [vmem:[%s237 + $0x170] sm:$0xff]
        %v343 = vld [vmem:[%s237 + $0x178] sm:$0xff]
        %v344 = vld [vmem:[%s237 + $0x180] sm:$0xff]
        %v345 = vld [vmem:[%s237 + $0x188] sm:$0xff]
        %v346 = vld [vmem:[%s237 + $0x190] sm:$0xff]
        %v347 = vld [vmem:[%s237 + $0x198] sm:$0xff]
        %v348 = vld [vmem:[%s237 + $0x1a0] sm:$0xff]
        %v349 = vld [vmem:[%s237 + $0x1a8] sm:$0xff]
        %v350 = vld [vmem:[%s237 + $0x1b0] sm:$0xff]
        %v351 = vld [vmem:[%s237 + $0x1b8] sm:$0xff]
        %v352 = vld [vmem:[%s237 + $0x1c0] sm:$0xff]
        %v353 = vld [vmem:[%s237 + $0x1c8] sm:$0xff]
        %v354 = vld [vmem:[%s237 + $0x1d0] sm:$0xff]
        %v355 = vld [vmem:[%s237 + $0x1d8] sm:$0xff]
        %v356 = vld [vmem:[%s237 + $0x1e0] sm:$0xff]
        %v357 = vld [vmem:[%s237 + $0x1e8] sm:$0xff]
        %v358 = vld [vmem:[%s237 + $0x1f0] sm:$0xff]
        %v359 = vld [vmem:[%s237 + $0x1f8] sm:$0xff]
        %v360 = vld [vmem:[%s247] sm:$0xff]
        %v361 = vld [vmem:[%s247 + $0x8] sm:$0xff]
        %v362 = vld [vmem:[%s247 + $0x10] sm:$0xff]
        %v363 = vld [vmem:[%s247 + $0x18] sm:$0xff]
        %v364 = vld [vmem:[%s247 + $0x20] sm:$0xff]
        %v365 = vld [vmem:[%s247 + $0x28] sm:$0xff]
        %v366 = vld [vmem:[%s247 + $0x30] sm:$0xff]
        %v367 = vld [vmem:[%s247 + $0x38] sm:$0xff]
        %v368 = vld [vmem:[%s247 + $0x40] sm:$0xff]
        %v369 = vld [vmem:[%s247 + $0x48] sm:$0xff]
        %v370 = vld [vmem:[%s247 + $0x50] sm:$0xff]
        %v371 = vld [vmem:[%s247 + $0x58] sm:$0xff]
        %v372 = vld [vmem:[%s247 + $0x60] sm:$0xff]
        %v373 = vld [vmem:[%s247 + $0x68] sm:$0xff]
        %v374 = vld [vmem:[%s247 + $0x70] sm:$0xff]
        %v375 = vld [vmem:[%s247 + $0x78] sm:$0xff]
        %v376 = vld [vmem:[%s247 + $0x80] sm:$0xff]
        %v377 = vld [vmem:[%s247 + $0x88] sm:$0xff]
        %v378 = vld [vmem:[%s247 + $0x90] sm:$0xff]
        %v379 = vld [vmem:[%s247 + $0x98] sm:$0xff]
        %v380 = vld [vmem:[%s247 + $0xa0] sm:$0xff]
        %v381 = vld [vmem:[%s247 + $0xa8] sm:$0xff]
        %v382 = vld [vmem:[%s247 + $0xb0] sm:$0xff]
        %v383 = vld [vmem:[%s247 + $0xb8] sm:$0xff]
        %v384 = vld [vmem:[%s247 + $0xc0] sm:$0xff]
        %v385 = vld [vmem:[%s247 + $0xc8] sm:$0xff]
        %v386 = vld [vmem:[%s247 + $0xd0] sm:$0xff]
        %v387 = vld [vmem:[%s247 + $0xd8] sm:$0xff]
        %v388 = vld [vmem:[%s247 + $0xe0] sm:$0xff]
        %v389 = vld [vmem:[%s247 + $0xe8] sm:$0xff]
        %v390 = vld [vmem:[%s247 + $0xf0] sm:$0xff]
        %v391 = vld [vmem:[%s247 + $0xf8] sm:$0xff]
        %v392 = vld [vmem:[%s247 + $0x100] sm:$0xff]
        %v393 = vld [vmem:[%s247 + $0x108] sm:$0xff]
        %v394 = vld [vmem:[%s247 + $0x110] sm:$0xff]
        %v395 = vld [vmem:[%s247 + $0x118] sm:$0xff]
        %v396 = vld [vmem:[%s247 + $0x120] sm:$0xff]
        %v397 = vld [vmem:[%s247 + $0x128] sm:$0xff]
        %v398 = vld [vmem:[%s247 + $0x130] sm:$0xff]
        %v399 = vld [vmem:[%s247 + $0x138] sm:$0xff]
        %v400 = vld [vmem:[%s247 + $0x140] sm:$0xff]
        %v401 = vld [vmem:[%s247 + $0x148] sm:$0xff]
        %v402 = vld [vmem:[%s247 + $0x150] sm:$0xff]
        %v403 = vld [vmem:[%s247 + $0x158] sm:$0xff]
        %v404 = vld [vmem:[%s247 + $0x160] sm:$0xff]
        %v405 = vld [vmem:[%s247 + $0x168] sm:$0xff]
        %v406 = vld [vmem:[%s247 + $0x170] sm:$0xff]
        %v407 = vld [vmem:[%s247 + $0x178] sm:$0xff]
        %v408 = vld [vmem:[%s247 + $0x180] sm:$0xff]
        %v409 = vld [vmem:[%s247 + $0x188] sm:$0xff]
        %v410 = vld [vmem:[%s247 + $0x190] sm:$0xff]
        %v411 = vld [vmem:[%s247 + $0x198] sm:$0xff]
        %v412 = vld [vmem:[%s247 + $0x1a0] sm:$0xff]
        %v413 = vld [vmem:[%s247 + $0x1a8] sm:$0xff]
        %v414 = vld [vmem:[%s247 + $0x1b0] sm:$0xff]
        %v415 = vld [vmem:[%s247 + $0x1b8] sm:$0xff]
        %v416 = vld [vmem:[%s247 + $0x1c0] sm:$0xff]
        %v417 = vld [vmem:[%s247 + $0x1c8] sm:$0xff]
        %v418 = vld [vmem:[%s247 + $0x1d0] sm:$0xff]
        %v419 = vld [vmem:[%s247 + $0x1d8] sm:$0xff]
        %v420 = vld [vmem:[%s247 + $0x1e0] sm:$0xff]
        %v421 = vld [vmem:[%s247 + $0x1e8] sm:$0xff]
        %v422 = vld [vmem:[%s247 + $0x1f0] sm:$0xff]
        %v423 = vld [vmem:[%s247 + $0x1f8] sm:$0xff]
        %v424 = vld [vmem:[#allocation6] sm:$0x3]
        %v425 = vld [vmem:[#allocation7] sm:$0x3]
        %v427 = vperm.slane %v424, 0
        %v428 = vperm.slane %v424, 1
        %v431 = vmul.f32 %v296, %v427
        %v432 = vmul.f32 %v297, %v428
        %v433 = vmul.f32 %v298, %v427
        %v434 = vmul.f32 %v299, %v428
        %v435 = vmul.f32 %v300, %v427
        %v436 = vmul.f32 %v301, %v428
        %v437 = vmul.f32 %v302, %v427
        %v438 = vmul.f32 %v303, %v428
        %v439 = vmul.f32 %v304, %v427
        %v440 = vmul.f32 %v305, %v428
        %v441 = vmul.f32 %v306, %v427
        %v442 = vmul.f32 %v307, %v428
        %v443 = vmul.f32 %v308, %v427
        %v444 = vmul.f32 %v309, %v428
        %v445 = vmul.f32 %v310, %v427
        %v446 = vmul.f32 %v311, %v428
        %v447 = vmul.f32 %v312, %v427
        %v448 = vmul.f32 %v313, %v428
        %v449 = vmul.f32 %v314, %v427
        %v450 = vmul.f32 %v315, %v428
        %v451 = vmul.f32 %v316, %v427
        %v452 = vmul.f32 %v317, %v428
        %v453 = vmul.f32 %v318, %v427
        %v454 = vmul.f32 %v319, %v428
        %v455 = vmul.f32 %v320, %v427
        %v456 = vmul.f32 %v321, %v428
        %v457 = vmul.f32 %v322, %v427
        %v458 = vmul.f32 %v323, %v428
        %v459 = vmul.f32 %v324, %v427
        %v460 = vmul.f32 %v325, %v428
        %v461 = vmul.f32 %v326, %v427
        %v462 = vmul.f32 %v327, %v428
        %v463 = vmul.f32 %v328, %v427
        %v464 = vmul.f32 %v329, %v428
        %v465 = vmul.f32 %v330, %v427
        %v466 = vmul.f32 %v331, %v428
        %v467 = vmul.f32 %v332, %v427
        %v468 = vmul.f32 %v333, %v428
        %v469 = vmul.f32 %v334, %v427
        %v470 = vmul.f32 %v335, %v428
        %v471 = vmul.f32 %v336, %v427
        %v472 = vmul.f32 %v337, %v428
        %v473 = vmul.f32 %v338, %v427
        %v474 = vmul.f32 %v339, %v428
        %v475 = vmul.f32 %v340, %v427
        %v476 = vmul.f32 %v341, %v428
        %v477 = vmul.f32 %v342, %v427
        %v478 = vmul.f32 %v343, %v428
        %v479 = vmul.f32 %v344, %v427
        %v480 = vmul.f32 %v345, %v428
        %v481 = vmul.f32 %v346, %v427
        %v482 = vmul.f32 %v347, %v428
        %v483 = vmul.f32 %v348, %v427
        %v484 = vmul.f32 %v349, %v428
        %v485 = vmul.f32 %v350, %v427
        %v486 = vmul.f32 %v351, %v428
        %v487 = vmul.f32 %v352, %v427
        %v488 = vmul.f32 %v353, %v428
        %v489 = vmul.f32 %v354, %v427
        %v490 = vmul.f32 %v355, %v428
        %v491 = vmul.f32 %v356, %v427
        %v492 = vmul.f32 %v357, %v428
        %v493 = vmul.f32 %v358, %v427
        %v494 = vmul.f32 %v359, %v428
        %v496 = vperm.slane %v425, 0
        %v497 = vperm.slane %v425, 1
        %v500 = vmul.f32 %v360, %v496
        %v501 = vmul.f32 %v361, %v497
        %v502 = vmul.f32 %v362, %v496
        %v503 = vmul.f32 %v363, %v497
        %v504 = vmul.f32 %v364, %v496
        %v505 = vmul.f32 %v365, %v497
        %v506 = vmul.f32 %v366, %v496
        %v507 = vmul.f32 %v367, %v497
        %v508 = vmul.f32 %v368, %v496
        %v509 = vmul.f32 %v369, %v497
        %v510 = vmul.f32 %v370, %v496
        %v511 = vmul.f32 %v371, %v497
        %v512 = vmul.f32 %v372, %v496
        %v513 = vmul.f32 %v373, %v497
        %v514 = vmul.f32 %v374, %v496
        %v515 = vmul.f32 %v375, %v497
        %v516 = vmul.f32 %v376, %v496
        %v517 = vmul.f32 %v377, %v497
        %v518 = vmul.f32 %v378, %v496
        %v519 = vmul.f32 %v379, %v497
        %v520 = vmul.f32 %v380, %v496
        %v521 = vmul.f32 %v381, %v497
        %v522 = vmul.f32 %v382, %v496
        %v523 = vmul.f32 %v383, %v497
        %v524 = vmul.f32 %v384, %v496
        %v525 = vmul.f32 %v385, %v497
        %v526 = vmul.f32 %v386, %v496
        %v527 = vmul.f32 %v387, %v497
        %v528 = vmul.f32 %v388, %v496
        %v529 = vmul.f32 %v389, %v497
        %v530 = vmul.f32 %v390, %v496
        %v531 = vmul.f32 %v391, %v497
        %v532 = vmul.f32 %v392, %v496
        %v533 = vmul.f32 %v393, %v497
        %v534 = vmul.f32 %v394, %v496
        %v535 = vmul.f32 %v395, %v497
        %v536 = vmul.f32 %v396, %v496
        %v537 = vmul.f32 %v397, %v497
        %v538 = vmul.f32 %v398, %v496
        %v539 = vmul.f32 %v399, %v497
        %v540 = vmul.f32 %v400, %v496
        %v541 = vmul.f32 %v401, %v497
        %v542 = vmul.f32 %v402, %v496
        %v543 = vmul.f32 %v403, %v497
        %v544 = vmul.f32 %v404, %v496
        %v545 = vmul.f32 %v405, %v497
        %v546 = vmul.f32 %v406, %v496
        %v547 = vmul.f32 %v407, %v497
        %v548 = vmul.f32 %v408, %v496
        %v549 = vmul.f32 %v409, %v497
        %v550 = vmul.f32 %v410, %v496
        %v551 = vmul.f32 %v411, %v497
        %v552 = vmul.f32 %v412, %v496
        %v553 = vmul.f32 %v413, %v497
        %v554 = vmul.f32 %v414, %v496
        %v555 = vmul.f32 %v415, %v497
        %v556 = vmul.f32 %v416, %v496
        %v557 = vmul.f32 %v417, %v497
        %v558 = vmul.f32 %v418, %v496
        %v559 = vmul.f32 %v419, %v497
        %v560 = vmul.f32 %v420, %v496
        %v561 = vmul.f32 %v421, %v497
        %v562 = vmul.f32 %v422, %v496
        %v563 = vmul.f32 %v423, %v497
        %v564 = vadd.f32 %v431, %v500
        %v565 = vadd.f32 %v432, %v501
        %v566 = vadd.f32 %v433, %v502
        %v567 = vadd.f32 %v434, %v503
        %v568 = vadd.f32 %v435, %v504
        %v569 = vadd.f32 %v436, %v505
        %v570 = vadd.f32 %v437, %v506
        %v571 = vadd.f32 %v438, %v507
        %v572 = vadd.f32 %v439, %v508
        %v573 = vadd.f32 %v440, %v509
        %v574 = vadd.f32 %v441, %v510
        %v575 = vadd.f32 %v442, %v511
        %v576 = vadd.f32 %v443, %v512
        %v577 = vadd.f32 %v444, %v513
        %v578 = vadd.f32 %v445, %v514
        %v579 = vadd.f32 %v446, %v515
        %v580 = vadd.f32 %v447, %v516
        %v581 = vadd.f32 %v448, %v517
        %v582 = vadd.f32 %v449, %v518
        %v583 = vadd.f32 %v450, %v519
        %v584 = vadd.f32 %v451, %v520
        %v585 = vadd.f32 %v452, %v521
        %v586 = vadd.f32 %v453, %v522
        %v587 = vadd.f32 %v454, %v523
        %v588 = vadd.f32 %v455, %v524
        %v589 = vadd.f32 %v456, %v525
        %v590 = vadd.f32 %v457, %v526
        %v591 = vadd.f32 %v458, %v527
        %v592 = vadd.f32 %v459, %v528
        %v593 = vadd.f32 %v460, %v529
        %v594 = vadd.f32 %v461, %v530
        %v595 = vadd.f32 %v462, %v531
        %v596 = vadd.f32 %v463, %v532
        %v597 = vadd.f32 %v464, %v533
        %v598 = vadd.f32 %v465, %v534
        %v599 = vadd.f32 %v466, %v535
        %v600 = vadd.f32 %v467, %v536
        %v601 = vadd.f32 %v468, %v537
        %v602 = vadd.f32 %v469, %v538
        %v603 = vadd.f32 %v470, %v539
        %v604 = vadd.f32 %v471, %v540
        %v605 = vadd.f32 %v472, %v541
        %v606 = vadd.f32 %v473, %v542
        %v607 = vadd.f32 %v474, %v543
        %v608 = vadd.f32 %v475, %v544
        %v609 = vadd.f32 %v476, %v545
        %v610 = vadd.f32 %v477, %v546
        %v611 = vadd.f32 %v478, %v547
        %v612 = vadd.f32 %v479, %v548
        %v613 = vadd.f32 %v480, %v549
        %v614 = vadd.f32 %v481, %v550
        %v615 = vadd.f32 %v482, %v551
        %v616 = vadd.f32 %v483, %v552
        %v617 = vadd.f32 %v484, %v553
        %v618 = vadd.f32 %v485, %v554
        %v619 = vadd.f32 %v486, %v555
        %v620 = vadd.f32 %v487, %v556
        %v621 = vadd.f32 %v488, %v557
        %v622 = vadd.f32 %v489, %v558
        %v623 = vadd.f32 %v490, %v559
        %v624 = vadd.f32 %v491, %v560
        %v625 = vadd.f32 %v492, %v561
        %v626 = vadd.f32 %v493, %v562
        %v627 = vadd.f32 %v494, %v563
        %v628 = vadd.f32 %v564, %v565
        %v629 = vadd.f32 %v566, %v567
        %v630 = vadd.f32 %v568, %v569
        %v631 = vadd.f32 %v570, %v571
        %v632 = vadd.f32 %v572, %v573
        %v633 = vadd.f32 %v574, %v575
        %v634 = vadd.f32 %v576, %v577
        %v635 = vadd.f32 %v578, %v579
        %v636 = vadd.f32 %v580, %v581
        %v637 = vadd.f32 %v582, %v583
        %v638 = vadd.f32 %v584, %v585
        %v639 = vadd.f32 %v586, %v587
        %v640 = vadd.f32 %v588, %v589
        %v641 = vadd.f32 %v590, %v591
        %v642 = vadd.f32 %v592, %v593
        %v643 = vadd.f32 %v594, %v595
        %v644 = vadd.f32 %v596, %v597
        %v645 = vadd.f32 %v598, %v599
        %v646 = vadd.f32 %v600, %v601
        %v647 = vadd.f32 %v602, %v603
        %v648 = vadd.f32 %v604, %v605
        %v649 = vadd.f32 %v606, %v607
        %v650 = vadd.f32 %v608, %v609
        %v651 = vadd.f32 %v610, %v611
        %v652 = vadd.f32 %v612, %v613
        %v653 = vadd.f32 %v614, %v615
        %v654 = vadd.f32 %v616, %v617
        %v655 = vadd.f32 %v618, %v619
        %v656 = vadd.f32 %v620, %v621
        %v657 = vadd.f32 %v622, %v623
        %v658 = vadd.f32 %v624, %v625
        %v659 = vadd.f32 %v626, %v627
        %660 = vadd.xlane.f32.xlu0 %v628
        %v661 = vpop.xlane.xlu0 %660
        %662 = vadd.xlane.f32.xlu0 %v629
        %v663 = vpop.xlane.xlu0 %662
        %664 = vadd.xlane.f32.xlu0 %v630
        %v665 = vpop.xlane.xlu0 %664
        %666 = vadd.xlane.f32.xlu0 %v631
        %v667 = vpop.xlane.xlu0 %666
        %668 = vadd.xlane.f32.xlu0 %v632
        %v669 = vpop.xlane.xlu0 %668
        %670 = vadd.xlane.f32.xlu0 %v633
        %v671 = vpop.xlane.xlu0 %670
        %672 = vadd.xlane.f32.xlu0 %v634
        %v673 = vpop.xlane.xlu0 %672
        %674 = vadd.xlane.f32.xlu0 %v635
        %v675 = vpop.xlane.xlu0 %674
        %676 = vadd.xlane.f32.xlu0 %v636
        %v677 = vpop.xlane.xlu0 %676
        %678 = vadd.xlane.f32.xlu0 %v637
        %v679 = vpop.xlane.xlu0 %678
        %680 = vadd.xlane.f32.xlu0 %v638
        %v681 = vpop.xlane.xlu0 %680
        %682 = vadd.xlane.f32.xlu0 %v639
        %v683 = vpop.xlane.xlu0 %682
        %684 = vadd.xlane.f32.xlu0 %v640
        %v685 = vpop.xlane.xlu0 %684
        %686 = vadd.xlane.f32.xlu0 %v641
        %v687 = vpop.xlane.xlu0 %686
        %688 = vadd.xlane.f32.xlu0 %v642
        %v689 = vpop.xlane.xlu0 %688
        %690 = vadd.xlane.f32.xlu0 %v643
        %v691 = vpop.xlane.xlu0 %690
        %692 = vadd.xlane.f32.xlu0 %v644
        %v693 = vpop.xlane.xlu0 %692
        %694 = vadd.xlane.f32.xlu0 %v645
        %v695 = vpop.xlane.xlu0 %694
        %696 = vadd.xlane.f32.xlu0 %v646
        %v697 = vpop.xlane.xlu0 %696
        %698 = vadd.xlane.f32.xlu0 %v647
        %v699 = vpop.xlane.xlu0 %698
        %700 = vadd.xlane.f32.xlu0 %v648
        %v701 = vpop.xlane.xlu0 %700
        %702 = vadd.xlane.f32.xlu0 %v649
        %v703 = vpop.xlane.xlu0 %702
        %704 = vadd.xlane.f32.xlu0 %v650
        %v705 = vpop.xlane.xlu0 %704
        %706 = vadd.xlane.f32.xlu0 %v651
        %v707 = vpop.xlane.xlu0 %706
        %708 = vadd.xlane.f32.xlu0 %v652
        %v709 = vpop.xlane.xlu0 %708
        %710 = vadd.xlane.f32.xlu0 %v653
        %v711 = vpop.xlane.xlu0 %710
        %712 = vadd.xlane.f32.xlu0 %v654
        %v713 = vpop.xlane.xlu0 %712
        %714 = vadd.xlane.f32.xlu0 %v655
        %v715 = vpop.xlane.xlu0 %714
        %716 = vadd.xlane.f32.xlu0 %v656
        %v717 = vpop.xlane.xlu0 %716
        %718 = vadd.xlane.f32.xlu0 %v657
        %v719 = vpop.xlane.xlu0 %718
        %720 = vadd.xlane.f32.xlu0 %v658
        %v721 = vpop.xlane.xlu0 %720
        %722 = vadd.xlane.f32.xlu0 %v659
        %v723 = vpop.xlane.xlu0 %722
        %vm724 = vcmask 7168
        %725 = vst.msk [vmem:[%s294] sm:$0xff] %vm724, %v661
        %726 = vst.msk [vmem:[%s294 + $0x8] sm:$0xff] %vm724, %v663
        %727 = vst.msk [vmem:[%s294 + $0x10] sm:$0xff] %vm724, %v665
        %728 = vst.msk [vmem:[%s294 + $0x18] sm:$0xff] %vm724, %v667
        %729 = vst.msk [vmem:[%s294 + $0x20] sm:$0xff] %vm724, %v669
        %730 = vst.msk [vmem:[%s294 + $0x28] sm:$0xff] %vm724, %v671
        %731 = vst.msk [vmem:[%s294 + $0x30] sm:$0xff] %vm724, %v673
        %732 = vst.msk [vmem:[%s294 + $0x38] sm:$0xff] %vm724, %v675
        %733 = vst.msk [vmem:[%s294 + $0x40] sm:$0xff] %vm724, %v677
        %734 = vst.msk [vmem:[%s294 + $0x48] sm:$0xff] %vm724, %v679
        %735 = vst.msk [vmem:[%s294 + $0x50] sm:$0xff] %vm724, %v681
        %736 = vst.msk [vmem:[%s294 + $0x58] sm:$0xff] %vm724, %v683
        %737 = vst.msk [vmem:[%s294 + $0x60] sm:$0xff] %vm724, %v685
        %738 = vst.msk [vmem:[%s294 + $0x68] sm:$0xff] %vm724, %v687
        %739 = vst.msk [vmem:[%s294 + $0x70] sm:$0xff] %vm724, %v689
        %740 = vst.msk [vmem:[%s294 + $0x78] sm:$0xff] %vm724, %v691
        %741 = vst.msk [vmem:[%s294 + $0x80] sm:$0xff] %vm724, %v693
        %742 = vst.msk [vmem:[%s294 + $0x88] sm:$0xff] %vm724, %v695
        %743 = vst.msk [vmem:[%s294 + $0x90] sm:$0xff] %vm724, %v697
        %744 = vst.msk [vmem:[%s294 + $0x98] sm:$0xff] %vm724, %v699
        %745 = vst.msk [vmem:[%s294 + $0xa0] sm:$0xff] %vm724, %v701
        %746 = vst.msk [vmem:[%s294 + $0xa8] sm:$0xff] %vm724, %v703
        %747 = vst.msk [vmem:[%s294 + $0xb0] sm:$0xff] %vm724, %v705
        %748 = vst.msk [vmem:[%s294 + $0xb8] sm:$0xff] %vm724, %v707
        %749 = vst.msk [vmem:[%s294 + $0xc0] sm:$0xff] %vm724, %v709
        %750 = vst.msk [vmem:[%s294 + $0xc8] sm:$0xff] %vm724, %v711
        %751 = vst.msk [vmem:[%s294 + $0xd0] sm:$0xff] %vm724, %v713
        %752 = vst.msk [vmem:[%s294 + $0xd8] sm:$0xff] %vm724, %v715
        %753 = vst.msk [vmem:[%s294 + $0xe0] sm:$0xff] %vm724, %v717
        %754 = vst.msk [vmem:[%s294 + $0xe8] sm:$0xff] %vm724, %v719
        %755 = vst.msk [vmem:[%s294 + $0xf0] sm:$0xff] %vm724, %v721
        %756 = vst.msk [vmem:[%s294 + $0xf8] sm:$0xff] %vm724, %v723
        %s757 = smul.u32 32, %s22
        %p758 = scmp.lt.s32.totalorder %s757, 255
        %s759 = scalar_select %p758, %s757, 255
        %s760 = smul.addr %s759, 8
        %s761 = scalar_lea.vmem %s4, %s760
        // Predicated region
        $region53: #{tpu_custom_call.1} parent=35 // pred_check
          %p762 = pneg %p134
        $region54: #{tpu_custom_call.1} parent=35 // pred_check_branch
          %764 = sbr.rel (%p762) target = $region56
        $region55: #{tpu_custom_call.1} parent=35 // pred_region
          %s765 = smul.u32 32, %s22
        $region56: #{tpu_custom_call.1} parent=35 // pred_fallthru
          _
      $region36: #{tpu_custom_call.1} parent=5 // pred_fallthru
        _
      %p766 = scmp.le.s32.totalorder 2, %s17
      // Predicated region
      $region57: #{tpu_custom_call.1} parent=5 // pred_check
        %p767 = pneg %p766
      $region58: #{tpu_custom_call.1} parent=5 // pred_check_branch
        %769 = sbr.rel (%p767) target = $region60
      $region59: #{tpu_custom_call.1} parent=5 // pred_region
        %s770 = ssub.s32 %s17, 2
        // Predicated region
        $region61: #{tpu_custom_call.1} parent=59 // pred_check
          %p771 = pneg %p140
        $region62: #{tpu_custom_call.1} parent=59 // pred_check_branch
          %773 = sbr.rel (%p771) target = $region64
        $region63: #{tpu_custom_call.1} parent=59 // pred_region
          %s774 = smul.u32 32, %s23
          %p775 = scmp.lt.s32.totalorder %s774, 255
          %s776 = scalar_select %p775, %s774, 255
          %s777 = smul.addr %s776, 8
          %s778 = scalar_lea.vmem %s4, %s777
        $region64: #{tpu_custom_call.1} parent=59 // pred_fallthru
          _
      $region60: #{tpu_custom_call.1} parent=5 // pred_fallthru
        _
    $region6: #{tpu_custom_call.1} parent=1 // loop_footer
      %s21 = sadd.s32 1, %s17
    $region7: #{tpu_custom_call.1} parent=1 // loop_footer_branch
      %16 = sbr.rel target = $region3
    $region8: #{tpu_custom_call.1} parent=1 // loop_exit
      _
    %779 = vsyncpa [#allocation3], 1
    %s780 = scalar_lea.sflag [#allocation3], 1
    %781 = vsyncpa %s780, 1
    %782 = vsyncpa [#allocation5], 1
    %s783 = scalar_lea.sflag [#allocation5], 1
    %784 = vsyncpa %s783, 1
    %785 = vsyncpa [#allocation8], 1

</llo_original>
